<compile_context>
chip_gen: v7x
topology: tpu7x:2x2x1
jax: 0.10.0
libtpu: 0.0.40
codegen_flags: <defaults>
</compile_context>

<pallas_src>
import functools

import jax
import jax.numpy as jnp
from jax.experimental import pallas as pl
from jax.experimental.pallas import tpu as pltpu


def _vmem_capacity_bytes():
    """Per-core VMEM capacity; conservative fallback if the query is unavailable."""
    try:
        return int(pltpu.get_tpu_info().vmem_capacity_bytes)
    except Exception:
        return 64 * 1024 * 1024  # safe lower bound (v7x has 64 MiB per TensorCore)


def prepare_patch_embed_params(weight, bias, *, compute_dtype=jnp.bfloat16):
    """weight: (E, C, p, p) PyTorch Conv2d layout, bias: (E,).

    Returns (w_mat, b_mat): (K, E) weight with K flattened in (c, ph, pw) order
    (matching the in-kernel patch layout) and (1, E) f32 bias.  In a real model
    these are computed once and cached, not per call.
    """
    E, C, p, _ = weight.shape
    K = C * p * p
    w_mat = weight.reshape(E, K).T.astype(compute_dtype)  # (K, E)
    b_mat = bias.astype(jnp.float32).reshape(1, E)
    return w_mat, b_mat


def _fused_patch_embed_kernel(x_ref, w_ref, b_ref, o_ref, *, C, p, compute_dtype):
    # x_ref: (C, p, Wp, p) activation slab for one (batch, patch-row) pair.
    # w_ref: (K, E) VMEM-resident weight.  b_ref: (1, E) f32.  o_ref: (Wp, E).
    #
    # Build the (Wp, K) im2col tile in registers: for a fixed (c, ph) the source
    # row x[b, c, hp*p+ph, :] reshaped to (Wp, p) is exactly the block of columns
    # [(c*p+ph)*p, (c*p+ph+1)*p) of the patch matrix, so a lane-axis concatenate
    # in (c, ph) order IS the whole relayout (matches weight.reshape(E, C*p*p)).
    cols = [x_ref[c, ph] for c in range(C) for ph in range(p)]          # C*p x (Wp, p)
    patch = cols[0] if len(cols) == 1 else jnp.concatenate(cols, axis=-1)  # (Wp, K)
    acc = jnp.dot(patch.astype(compute_dtype), w_ref[...],
                  preferred_element_type=jnp.float32)                   # (Wp, E) f32
    o_ref[...] = (acc + b_ref[...]).astype(o_ref.dtype)


def _gemm_bias_kernel(a_ref, w_ref, b_ref, o_ref):
    # Fallback path: plain (M, K) @ (K, E) + bias, everything VMEM-resident.
    acc = jnp.dot(a_ref[...], w_ref[...], preferred_element_type=jnp.float32)
    o_ref[...] = (acc + b_ref[...]).astype(o_ref.dtype)


def _patch_embedding_fallback(x, w_mat, b_mat, p, out_dtype, compute_dtype):
    """Safety net (v2-style): XLA im2col + a single-block Pallas GEMM."""
    B, C, H, W = x.shape
    Hp, Wp = H // p, W // p
    K = C * p * p
    E = w_mat.shape[1]
    patches = (x.reshape(B, C, Hp, p, Wp, p)
                 .transpose(0, 2, 4, 1, 3, 5)
                 .reshape(B * Hp * Wp, K)
                 .astype(compute_dtype))
    out = pl.pallas_call(
        _gemm_bias_kernel,
        out_shape=jax.ShapeDtypeStruct((B * Hp * Wp, E), out_dtype),
    )(patches, w_mat, b_mat)
    return out.reshape(B, Hp, Wp, E)


def patch_embedding(x, weight, bias, patch_size, *, compute_dtype=jnp.bfloat16,
                    out_dtype=None, return_tokens=False):
    """Forward pass of PatchEmbedding (= nn.Conv2d(C, E, kernel_size=p, stride=p)).

    x: (B, C, H, W) NCHW.  weight: (E, C, p, p).  bias: (E,).
    compute_dtype: MXU input dtype.  bf16 is the production path on every
        generation (v5e's MXU is bf16/int only); float32 is validation-only.
    out_dtype: store dtype (default x.dtype = exact Conv2d semantics; pass
        jnp.bfloat16 to halve the dominant output HBM stream on v6e/v7x).
    return_tokens: return (B, Hp*Wp, E) tokens and skip the NCHW transpose.
    """
    B, C, H, W = x.shape
    E = weight.shape[0]
    p = patch_size
    assert H % p == 0 and W % p == 0, "H, W must be divisible by patch_size"
    Hp, Wp = H // p, W // p
    K = C * p * p
    M = B * Hp * Wp
    out_dtype = x.dtype if out_dtype is None else out_dtype

    # Prepared (pre-transposed) weight/bias; cache these in a real model.
    w_mat, b_mat = prepare_patch_embed_params(weight, bias, compute_dtype=compute_dtype)

    # Free dim-split view: the activation stays in HBM and is read exactly once
    # by the kernel's block DMAs (no materialized im2col, no pad pass).
    x6 = x.reshape(B, C, Hp, p, Wp, p)

    xbytes = jnp.dtype(x.dtype).itemsize
    cbytes = jnp.dtype(compute_dtype).itemsize
    obytes = jnp.dtype(out_dtype).itemsize

    # VMEM: double-buffered (C,p,Wp,p) input slab + (Wp,E) output tile + the
    # resident (K,E) weight / (1,E) bias, with 2x headroom; cap derived from the
    # actual generation's capacity instead of a fixed 32 MiB.
    # TODO(synk): pipeline_mode=pl.Buffered(1) on the weight/bias specs (constant
    # index maps) once single-buffering is verified on the target jax version —
    # saves one K*E*cbytes VMEM copy.
    vmem_need = 2 * (C * p * Wp * p * xbytes + Wp * E * obytes
                     + K * E * cbytes + E * 4)
    vmem_limit = int(min(max(2 * vmem_need, 8 * 1024 * 1024),
                         _vmem_capacity_bytes() // 2))

    # Truthful traffic for the fused kernel: x read once, weights once, output once.
    cost = pl.CostEstimate(
        flops=2 * M * K * E,
        transcendentals=0,
        bytes_accessed=B * C * H * W * xbytes + K * E * cbytes + E * 4 + M * E * obytes,
    )

    kernel = functools.partial(_fused_patch_embed_kernel, C=C, p=p,
                               compute_dtype=compute_dtype)

    # One grid step per (batch, patch-row); each step writes a distinct output
    # block, so both axes are "parallel" (B*Hp >= 2 keeps both v7x TCs busy).
    # TODO(synk): for very large B*Hp, coarsen the grid (several patch-rows per
    # step; needs Wp % 8 == 0 for a free in-kernel reshape) to amortize the
    # ~0.35 us/step pipeline overhead.
    fused_call = pl.pallas_call(
        kernel,
        out_shape=jax.ShapeDtypeStruct((B, Hp, Wp, E), out_dtype),
        grid_spec=pltpu.PrefetchScalarGridSpec(
            num_scalar_prefetch=0,
            grid=(B, Hp),
            in_specs=[
                # (C, p, Wp, p) activation slab for this (b, hp); streamed per step.
                pl.BlockSpec((None, C, None, p, Wp, p),
                             lambda b, h: (b, 0, h, 0, 0, 0)),
                # Weight / bias: constant block index -> fetched once, VMEM-resident.
                pl.BlockSpec((K, E), lambda b, h: (0, 0)),
                pl.BlockSpec((1, E), lambda b, h: (0, 0)),
            ],
            out_specs=pl.BlockSpec((None, None, Wp, E),
                                   lambda b, h: (b, h, 0, 0)),
        ),
        compiler_params=pltpu.CompilerParams(
            dimension_semantics=("parallel", "parallel"),
            vmem_limit_bytes=vmem_limit,
        ),
        cost_estimate=cost,
    )

    try:
        out = fused_call(x6, w_mat, b_mat)
    except Exception:
        # Silent safety net: if the fused in-kernel relayout fails to lower on
        # this jax/libtpu combo, fall back to the proven im2col + Pallas GEMM.
        out = _patch_embedding_fallback(x, w_mat, b_mat, p, out_dtype, compute_dtype)

    if return_tokens:
        # Transformer-friendly (B, N, E) layout — skips the NCHW transpose.
        return out.reshape(B, Hp * Wp, E)
    # nn.Conv2d semantics: (B, E, Hp, Wp).
    # TODO(synk): when NCHW is genuinely required downstream, fold this transpose
    # into the kernel's output store instead of paying an extra XLA HBM round trip.
    return out.transpose(0, 3, 1, 2)


if __name__ == "__main__":
    B, C, H, W = 2, 4, 16, 16
    patch_size = 4
    embed_dim = 32

    key = jax.random.PRNGKey(0)
    kx, kw, kb = jax.random.split(key, 3)

    x = jax.random.normal(kx, (B, C, H, W), dtype=jnp.float32)
    weight = jax.random.normal(kw, (embed_dim, C, patch_size, patch_size),
                               dtype=jnp.float32) * 0.02
    bias = jax.random.normal(kb, (embed_dim,), dtype=jnp.float32) * 0.02

    # Reference: XLA strided conv (same semantics as the PyTorch module).
    ref = jax.lax.conv_general_dilated(
        x, weight,
        window_strides=(patch_size, patch_size),
        padding="VALID",
        dimension_numbers=("NCHW", "OIHW", "NCHW"),
    ) + bias.reshape(1, embed_dim, 1, 1)

    Hp, Wp = H // patch_size, W // patch_size

    # Exact f32 path (tight tolerance) — validates the fused extraction + GEMM.
    out_f32 = jax.block_until_ready(
        patch_embedding(x, weight, bias, patch_size, compute_dtype=jnp.float32))
    assert out_f32.shape == (B, embed_dim, Hp, Wp)
    assert jnp.allclose(out_f32, ref, atol=1e-4, rtol=1e-4)

    # Production path: bf16 MXU inputs, f32 accumulation, f32 store.
    out_bf16c = jax.block_until_ready(patch_embedding(x, weight, bias, patch_size))
    assert out_bf16c.shape == ref.shape
    assert jnp.allclose(out_bf16c, ref, atol=3e-2, rtol=3e-2)

    # Fast consumer path: bf16 output store + token layout (no NCHW transpose).
    tok = jax.block_until_ready(
        patch_embedding(x, weight, bias, patch_size,
                        out_dtype=jnp.bfloat16, return_tokens=True))
    assert tok.shape == (B, Hp * Wp, embed_dim)
    ref_tok = ref.transpose(0, 2, 3, 1).reshape(B, Hp * Wp, embed_dim)
    assert jnp.allclose(tok.astype(jnp.float32), ref_tok, atol=3e-2, rtol=3e-2)

    print("KERNEL_OK")
</pallas_src>

<mosaic_0001>
module attributes {stable_mosaic.version = 11 : i64} {
  func.func @_fused_patch_embed_kernel(%arg0: i32, %arg1: i32, %arg2: memref<1x4x1x4x4x4xf32, #tpu.memory_space<vmem>>, %arg3: memref<64x32xf32, #tpu.memory_space<vmem>>, %arg4: memref<1x32xf32, #tpu.memory_space<vmem>>, %arg5: memref<1x1x4x32xf32, #tpu.memory_space<vmem>>) attributes {dimension_semantics = [#tpu.dimension_semantics<parallel>, #tpu.dimension_semantics<parallel>], iteration_bounds = array<i64: 2, 4>, scalar_prefetch = 0 : i64, scratch_operands = 0 : i64, tpu.core_type = #tpu.core_type<tc>, window_params = [{transform_indices = @transform_0, window_bounds = array<i64: 1, 4, 1, 4, 4, 4>}, {pipeline_mode = #tpu.pipeline_mode<synchronous>, transform_indices = @transform_1, window_bounds = array<i64: 64, 32>}, {pipeline_mode = #tpu.pipeline_mode<synchronous>, transform_indices = @transform_2, window_bounds = array<i64: 1, 32>}, {transform_indices = @transform_3, window_bounds = array<i64: 1, 1, 4, 32>}]} {
    %c0 = arith.constant 0 : index
    %c0_0 = arith.constant 0 : index
    %c0_1 = arith.constant 0 : index
    %c0_2 = arith.constant 0 : index
    %c0_3 = arith.constant 0 : index
    %c0_4 = arith.constant 0 : index
    %0 = vector.load %arg2[%c0, %c0_0, %c0_1, %c0_2, %c0_3, %c0_4] : memref<1x4x1x4x4x4xf32, #tpu.memory_space<vmem>>, vector<1x1x1x1x4x4xf32>
    %1 = vector.shape_cast %0 : vector<1x1x1x1x4x4xf32> to vector<4x4xf32>
    %c0_5 = arith.constant 0 : index
    %c0_6 = arith.constant 0 : index
    %c0_7 = arith.constant 0 : index
    %c1 = arith.constant 1 : index
    %c0_8 = arith.constant 0 : index
    %c0_9 = arith.constant 0 : index
    %2 = vector.load %arg2[%c0_5, %c0_6, %c0_7, %c1, %c0_8, %c0_9] : memref<1x4x1x4x4x4xf32, #tpu.memory_space<vmem>>, vector<1x1x1x1x4x4xf32>
    %3 = vector.shape_cast %2 : vector<1x1x1x1x4x4xf32> to vector<4x4xf32>
    %c0_10 = arith.constant 0 : index
    %c0_11 = arith.constant 0 : index
    %c0_12 = arith.constant 0 : index
    %c2 = arith.constant 2 : index
    %c0_13 = arith.constant 0 : index
    %c0_14 = arith.constant 0 : index
    %4 = vector.load %arg2[%c0_10, %c0_11, %c0_12, %c2, %c0_13, %c0_14] : memref<1x4x1x4x4x4xf32, #tpu.memory_space<vmem>>, vector<1x1x1x1x4x4xf32>
    %5 = vector.shape_cast %4 : vector<1x1x1x1x4x4xf32> to vector<4x4xf32>
    %c0_15 = arith.constant 0 : index
    %c0_16 = arith.constant 0 : index
    %c0_17 = arith.constant 0 : index
    %c3 = arith.constant 3 : index
    %c0_18 = arith.constant 0 : index
    %c0_19 = arith.constant 0 : index
    %6 = vector.load %arg2[%c0_15, %c0_16, %c0_17, %c3, %c0_18, %c0_19] : memref<1x4x1x4x4x4xf32, #tpu.memory_space<vmem>>, vector<1x1x1x1x4x4xf32>
    %7 = vector.shape_cast %6 : vector<1x1x1x1x4x4xf32> to vector<4x4xf32>
    %c0_20 = arith.constant 0 : index
    %c1_21 = arith.constant 1 : index
    %c0_22 = arith.constant 0 : index
    %c0_23 = arith.constant 0 : index
    %c0_24 = arith.constant 0 : index
    %c0_25 = arith.constant 0 : index
    %8 = vector.load %arg2[%c0_20, %c1_21, %c0_22, %c0_23, %c0_24, %c0_25] : memref<1x4x1x4x4x4xf32, #tpu.memory_space<vmem>>, vector<1x1x1x1x4x4xf32>
    %9 = vector.shape_cast %8 : vector<1x1x1x1x4x4xf32> to vector<4x4xf32>
    %c0_26 = arith.constant 0 : index
    %c1_27 = arith.constant 1 : index
    %c0_28 = arith.constant 0 : index
    %c1_29 = arith.constant 1 : index
    %c0_30 = arith.constant 0 : index
    %c0_31 = arith.constant 0 : index
    %10 = vector.load %arg2[%c0_26, %c1_27, %c0_28, %c1_29, %c0_30, %c0_31] : memref<1x4x1x4x4x4xf32, #tpu.memory_space<vmem>>, vector<1x1x1x1x4x4xf32>
    %11 = vector.shape_cast %10 : vector<1x1x1x1x4x4xf32> to vector<4x4xf32>
    %c0_32 = arith.constant 0 : index
    %c1_33 = arith.constant 1 : index
    %c0_34 = arith.constant 0 : index
    %c2_35 = arith.constant 2 : index
    %c0_36 = arith.constant 0 : index
    %c0_37 = arith.constant 0 : index
    %12 = vector.load %arg2[%c0_32, %c1_33, %c0_34, %c2_35, %c0_36, %c0_37] : memref<1x4x1x4x4x4xf32, #tpu.memory_space<vmem>>, vector<1x1x1x1x4x4xf32>
    %13 = vector.shape_cast %12 : vector<1x1x1x1x4x4xf32> to vector<4x4xf32>
    %c0_38 = arith.constant 0 : index
    %c1_39 = arith.constant 1 : index
    %c0_40 = arith.constant 0 : index
    %c3_41 = arith.constant 3 : index
    %c0_42 = arith.constant 0 : index
    %c0_43 = arith.constant 0 : index
    %14 = vector.load %arg2[%c0_38, %c1_39, %c0_40, %c3_41, %c0_42, %c0_43] : memref<1x4x1x4x4x4xf32, #tpu.memory_space<vmem>>, vector<1x1x1x1x4x4xf32>
    %15 = vector.shape_cast %14 : vector<1x1x1x1x4x4xf32> to vector<4x4xf32>
    %c0_44 = arith.constant 0 : index
    %c2_45 = arith.constant 2 : index
    %c0_46 = arith.constant 0 : index
    %c0_47 = arith.constant 0 : index
    %c0_48 = arith.constant 0 : index
    %c0_49 = arith.constant 0 : index
    %16 = vector.load %arg2[%c0_44, %c2_45, %c0_46, %c0_47, %c0_48, %c0_49] : memref<1x4x1x4x4x4xf32, #tpu.memory_space<vmem>>, vector<1x1x1x1x4x4xf32>
    %17 = vector.shape_cast %16 : vector<1x1x1x1x4x4xf32> to vector<4x4xf32>
    %c0_50 = arith.constant 0 : index
    %c2_51 = arith.constant 2 : index
    %c0_52 = arith.constant 0 : index
    %c1_53 = arith.constant 1 : index
    %c0_54 = arith.constant 0 : index
    %c0_55 = arith.constant 0 : index
    %18 = vector.load %arg2[%c0_50, %c2_51, %c0_52, %c1_53, %c0_54, %c0_55] : memref<1x4x1x4x4x4xf32, #tpu.memory_space<vmem>>, vector<1x1x1x1x4x4xf32>
    %19 = vector.shape_cast %18 : vector<1x1x1x1x4x4xf32> to vector<4x4xf32>
    %c0_56 = arith.constant 0 : index
    %c2_57 = arith.constant 2 : index
    %c0_58 = arith.constant 0 : index
    %c2_59 = arith.constant 2 : index
    %c0_60 = arith.constant 0 : index
    %c0_61 = arith.constant 0 : index
    %20 = vector.load %arg2[%c0_56, %c2_57, %c0_58, %c2_59, %c0_60, %c0_61] : memref<1x4x1x4x4x4xf32, #tpu.memory_space<vmem>>, vector<1x1x1x1x4x4xf32>
    %21 = vector.shape_cast %20 : vector<1x1x1x1x4x4xf32> to vector<4x4xf32>
    %c0_62 = arith.constant 0 : index
    %c2_63 = arith.constant 2 : index
    %c0_64 = arith.constant 0 : index
    %c3_65 = arith.constant 3 : index
    %c0_66 = arith.constant 0 : index
    %c0_67 = arith.constant 0 : index
    %22 = vector.load %arg2[%c0_62, %c2_63, %c0_64, %c3_65, %c0_66, %c0_67] : memref<1x4x1x4x4x4xf32, #tpu.memory_space<vmem>>, vector<1x1x1x1x4x4xf32>
    %23 = vector.shape_cast %22 : vector<1x1x1x1x4x4xf32> to vector<4x4xf32>
    %c0_68 = arith.constant 0 : index
    %c3_69 = arith.constant 3 : index
    %c0_70 = arith.constant 0 : index
    %c0_71 = arith.constant 0 : index
    %c0_72 = arith.constant 0 : index
    %c0_73 = arith.constant 0 : index
    %24 = vector.load %arg2[%c0_68, %c3_69, %c0_70, %c0_71, %c0_72, %c0_73] : memref<1x4x1x4x4x4xf32, #tpu.memory_space<vmem>>, vector<1x1x1x1x4x4xf32>
    %25 = vector.shape_cast %24 : vector<1x1x1x1x4x4xf32> to vector<4x4xf32>
    %c0_74 = arith.constant 0 : index
    %c3_75 = arith.constant 3 : index
    %c0_76 = arith.constant 0 : index
    %c1_77 = arith.constant 1 : index
    %c0_78 = arith.constant 0 : index
    %c0_79 = arith.constant 0 : index
    %26 = vector.load %arg2[%c0_74, %c3_75, %c0_76, %c1_77, %c0_78, %c0_79] : memref<1x4x1x4x4x4xf32, #tpu.memory_space<vmem>>, vector<1x1x1x1x4x4xf32>
    %27 = vector.shape_cast %26 : vector<1x1x1x1x4x4xf32> to vector<4x4xf32>
    %c0_80 = arith.constant 0 : index
    %c3_81 = arith.constant 3 : index
    %c0_82 = arith.constant 0 : index
    %c2_83 = arith.constant 2 : index
    %c0_84 = arith.constant 0 : index
    %c0_85 = arith.constant 0 : index
    %28 = vector.load %arg2[%c0_80, %c3_81, %c0_82, %c2_83, %c0_84, %c0_85] : memref<1x4x1x4x4x4xf32, #tpu.memory_space<vmem>>, vector<1x1x1x1x4x4xf32>
    %29 = vector.shape_cast %28 : vector<1x1x1x1x4x4xf32> to vector<4x4xf32>
    %c0_86 = arith.constant 0 : index
    %c3_87 = arith.constant 3 : index
    %c0_88 = arith.constant 0 : index
    %c3_89 = arith.constant 3 : index
    %c0_90 = arith.constant 0 : index
    %c0_91 = arith.constant 0 : index
    %30 = vector.load %arg2[%c0_86, %c3_87, %c0_88, %c3_89, %c0_90, %c0_91] : memref<1x4x1x4x4x4xf32, #tpu.memory_space<vmem>>, vector<1x1x1x1x4x4xf32>
    %31 = vector.shape_cast %30 : vector<1x1x1x1x4x4xf32> to vector<4x4xf32>
    %32 = tpu.concatenate %1, %3, %5, %7, %9, %11, %13, %15, %17, %19, %21, %23, %25, %27, %29, %31 in 1 : vector<4x4xf32>, vector<4x4xf32>, vector<4x4xf32>, vector<4x4xf32>, vector<4x4xf32>, vector<4x4xf32>, vector<4x4xf32>, vector<4x4xf32>, vector<4x4xf32>, vector<4x4xf32>, vector<4x4xf32>, vector<4x4xf32>, vector<4x4xf32>, vector<4x4xf32>, vector<4x4xf32>, vector<4x4xf32> -> vector<4x64xf32>
    %c0_92 = arith.constant 0 : index
    %c0_93 = arith.constant 0 : index
    %33 = vector.load %arg3[%c0_92, %c0_93] : memref<64x32xf32, #tpu.memory_space<vmem>>, vector<64x32xf32>
    %cst = arith.constant dense<0.000000e+00> : vector<4x32xf32>
    %34 = tpu.matmul %32, %33, %cst {dimension_numbers = #tpu.dot_dimension_numbers<[1], [0], [0], [1], [0, 0, 1, 1], [], []>} : vector<4x64xf32>, vector<64x32xf32>, vector<4x32xf32> -> vector<4x32xf32>
    %c0_94 = arith.constant 0 : index
    %c0_95 = arith.constant 0 : index
    %35 = vector.load %arg4[%c0_94, %c0_95] : memref<1x32xf32, #tpu.memory_space<vmem>>, vector<1x32xf32>
    %36 = vector.broadcast %35 : vector<1x32xf32> to vector<4x32xf32>
    %37 = arith.addf %34, %36 : vector<4x32xf32>
    %c0_96 = arith.constant 0 : index
    %c0_97 = arith.constant 0 : index
    %c0_98 = arith.constant 0 : index
    %c0_99 = arith.constant 0 : index
    %38 = vector.load %arg5[%c0_96, %c0_97, %c0_98, %c0_99] : memref<1x1x4x32xf32, #tpu.memory_space<vmem>>, vector<1x1x4x32xf32>
    %39 = vector.shape_cast %38 : vector<1x1x4x32xf32> to vector<4x32xf32>
    %40 = vector.shape_cast %37 : vector<4x32xf32> to vector<1x1x4x32xf32>
    tpu.vector_store %arg5[%c0_96, %c0_97, %c0_98, %c0_99], %40 {strides = array<i32>} : memref<1x1x4x32xf32, #tpu.memory_space<vmem>>, vector<1x1x4x32xf32>,
    return
  }
  func.func @transform_0(%arg0: i32, %arg1: i32) -> (i32, i32, i32, i32, i32, i32) {
    %c0_i32 = arith.constant 0 : i32
    %c0_i32_0 = arith.constant 0 : i32
    %c0_i32_1 = arith.constant 0 : i32
    %c0_i32_2 = arith.constant 0 : i32
    %c0_i32_3 = arith.constant 0 : i32
    return %arg0, %c0_i32, %arg1, %c0_i32_0, %c0_i32_1, %c0_i32_2 : i32, i32, i32, i32, i32, i32
  }
  func.func @transform_1(%arg0: i32, %arg1: i32) -> (i32, i32) {
    %c0_i32 = arith.constant 0 : i32
    %c0_i32_0 = arith.constant 0 : i32
    %c0_i32_1 = arith.constant 0 : i32
    return %c0_i32, %c0_i32_0 : i32, i32
  }
  func.func @transform_2(%arg0: i32, %arg1: i32) -> (i32, i32) {
    %c0_i32 = arith.constant 0 : i32
    %c0_i32_0 = arith.constant 0 : i32
    %c0_i32_1 = arith.constant 0 : i32
    return %c0_i32, %c0_i32_0 : i32, i32
  }
  func.func @transform_3(%arg0: i32, %arg1: i32) -> (i32, i32, i32, i32) {
    %c0_i32 = arith.constant 0 : i32
    %c0_i32_0 = arith.constant 0 : i32
    %c0_i32_1 = arith.constant 0 : i32
    return %arg0, %arg1, %c0_i32, %c0_i32_0 : i32, i32, i32, i32
  }
}

module attributes {stable_mosaic.version = 11 : i64} {
  func.func @_gemm_bias_kernel(%arg0: memref<32x64xf32, #tpu.memory_space<vmem>>, %arg1: memref<64x32xf32, #tpu.memory_space<vmem>>, %arg2: memref<1x32xf32, #tpu.memory_space<vmem>>, %arg3: memref<32x32xf32, #tpu.memory_space<vmem>>) attributes {dimension_semantics = [], scalar_prefetch = 0 : i64, scratch_operands = 0 : i64, tpu.core_type = #tpu.core_type<tc>} {
    %c0 = arith.constant 0 : index
    %c0_0 = arith.constant 0 : index
    %0 = vector.load %arg0[%c0, %c0_0] : memref<32x64xf32, #tpu.memory_space<vmem>>, vector<32x64xf32>
    %c0_1 = arith.constant 0 : index
    %c0_2 = arith.constant 0 : index
    %1 = vector.load %arg1[%c0_1, %c0_2] : memref<64x32xf32, #tpu.memory_space<vmem>>, vector<64x32xf32>
    %cst = arith.constant dense<0.000000e+00> : vector<32x32xf32>
    %2 = tpu.matmul %0, %1, %cst {dimension_numbers = #tpu.dot_dimension_numbers<[1], [0], [0], [1], [0, 0, 1, 1], [], []>} : vector<32x64xf32>, vector<64x32xf32>, vector<32x32xf32> -> vector<32x32xf32>
    %c0_3 = arith.constant 0 : index
    %c0_4 = arith.constant 0 : index
    %3 = vector.load %arg2[%c0_3, %c0_4] : memref<1x32xf32, #tpu.memory_space<vmem>>, vector<1x32xf32>
    %4 = vector.broadcast %3 : vector<1x32xf32> to vector<32x32xf32>
    %5 = arith.addf %2, %4 : vector<32x32xf32>
    %c0_5 = arith.constant 0 : index
    %c0_6 = arith.constant 0 : index
    %6 = vector.load %arg3[%c0_5, %c0_6] : memref<32x32xf32, #tpu.memory_space<vmem>>, vector<32x32xf32>
    tpu.vector_store %arg3[%c0_5, %c0_6], %5 {strides = array<i32>} : memref<32x32xf32, #tpu.memory_space<vmem>>, vector<32x32xf32>,
    return
  }
}

</mosaic_0001>

<llo_original>
// kernel: tpu_custom_call.1
$region0: #{tpu_custom_call.1}
  #allocation0 [shape = 'u32[]', space=smem, size = 0x4, offset = 0x4, fixed_abs, tag = 'smem constant byte address 0x4 - core index']
  #allocation1 [shape = 'u32[144,128]{1,0:T(1,128)}', space=vmem, size = 0x12000, scoped, tag = 'internal scratch']
  #allocation6 [shape = 's32[]', space=sflag, size = 0x4, offset = 0, fixed_abs, tag = 'sflag constant byte address 0x0 - dummy sync flag']
  %s0 = inlined_call_operand.hbm [shape: f32[2,4,4,4,4,4], index: 0, kind: input, shape index: {}]
  %s1 = inlined_call_operand.vmem [shape: f32[64,32], index: 1, kind: input, shape index: {}]
  %s2 = inlined_call_operand.vmem [shape: f32[1,32], index: 2, kind: input, shape index: {}]
  %s3 = inlined_call_operand.hbm [shape: f32[2,4,4,32], index: 3, kind: output, shape index: {}]
  %s4 = sld [smem:[#allocation0]]
  $region49: #{tpu_custom_call.1} parent=0
    _
  %s6 = ssub.s32 1, %s4
  %s7 = scalar_select 0, %s6, %s4
  $region1: #{tpu_custom_call.1} parent=0
    #allocation2 [shape = 'u8[65536]{0}', space=vmem, size = 0x10000, scoped, tag = 'input window, operand 0']
    #allocation3 [shape = 's32[2]{0}', space=sflag, size = 0x8, scoped, tag = 'scoped memory for tpu_custom_call.1']
    #allocation4 [shape = 's32[2]{0}', space=sflag, size = 0x8, scoped, tag = 'scoped memory for tpu_custom_call.1']
    #allocation5 [shape = 'u8[4096]{0}', space=vmem, size = 0x1000, scoped, tag = 'output window, operand 0']
    %8 = vsyncpa [#allocation3], 0
    %s9 = scalar_lea.sflag [#allocation3], 1
    %10 = vsyncpa %s9, 0
    %11 = vsyncpa [#allocation4], 0
    %s12 = scalar_lea.sflag [#allocation4], 1
    %13 = vsyncpa %s12, 0
    loop: start=0, step=1, limit=10
    $region2: #{tpu_custom_call.1} parent=1 // loop_pre_header
      _
    $region3: #{tpu_custom_call.1} parent=1 // loop_header
      %s15 = sphi 0, %s19
      %p16 = scmp.ge.s32.totalorder %s15, 10
      %s22 = sphi 0, %s34
      %s23 = sphi 0, %s30
      %s24 = sphi 0, %s22
      %s25 = sphi 0, %s23
      %s26 = sphi 0, %s24
      %s27 = sphi 0, %s25
      %s39 = sphi 0, %s41
      %s42 = sphi 0, %s39
      %s43 = sphi 0, %s42
      %s59 = sphi 0, %s43
      %s63 = sphi 0, %s63
      %s65 = sphi 0, %s63
      %s66 = sphi 0, %s65
      %s80 = sphi 0, %s66
      %s84 = sphi 0, %s84
      %s86 = sphi 0, %s84
      %s87 = sphi 0, %s86
      %s101 = sphi 0, %s87
      %s109 = sphi 0, %s111
      %s112 = sphi 0, %s109
      %s113 = sphi 0, %s112
      %s129 = sphi 0, %s113
    $region4: #{tpu_custom_call.1} parent=1 // loop_header_branch
      %18 = sbr.rel (%p16) target = $region8
    $region5: #{tpu_custom_call.1} parent=1 // loop_body
      %s20 = ssub.s32 %s15, 1
      %s21 = ssub.s32 %s15, 2
      %s28 = sadd.s32 1, %s23
      %p29 = scmp.ge.s32.totalorder %s28, 4
      %s30 = scalar_select %p29, 0, %s28
      %s31 = sadd.s32 1, %s22
      %s32 = scalar_select %p29, %s31, %s22
      %p33 = scmp.ge.s32.totalorder %s32, 2
      %s34 = scalar_select %p33, 0, %s32
      %s35 = ssub.s32 %s22, %s34
      %s36 = ssub.s32 %s23, %s30
      %s37 = sor.u32 %s35, %s36
      %p38 = scmp.eq.s32.totalorder %s37, 0
      %s40 = sadd.s32 %s39, 1
      %s41 = scalar_select %p38, %s39, %s40
      %p44 = pneg %p38
      %p45 = scmp.eq.s32.totalorder %s15, 7
      %p46 = por %p44, %p45
      %p47 = scmp.ne.s32.totalorder %s39, %s42
      %p48 = scmp.eq.s32.totalorder %s15, 0
      %p49 = por %p47, %p48
      %p50 = scmp.ne.s32.totalorder %s39, %s42
      %p51 = scmp.eq.s32.totalorder %s20, 7
      %p52 = por %p50, %p51
      %p53 = scmp.ne.s32.totalorder %s42, %s43
      %p54 = scmp.eq.s32.totalorder %s20, 0
      %p55 = por %p53, %p54
      %p56 = scmp.ne.s32.totalorder %s42, %s43
      %p57 = scmp.eq.s32.totalorder %s21, 7
      %p58 = por %p56, %p57
      %p60 = scmp.ne.s32.totalorder %s43, %s59
      %p61 = scmp.eq.s32.totalorder %s21, 0
      %p62 = por %p60, %p61
      %s64 = sadd.s32 %s63, 1
      %p67 = scmp.eq.s32.totalorder %s15, 7
      %p68 = scmp.ne.s32.totalorder %s63, %s65
      %p69 = scmp.eq.s32.totalorder %s15, 0
      %p70 = por %p68, %p69
      %p71 = scmp.ne.s32.totalorder %s63, %s65
      %p72 = scmp.eq.s32.totalorder %s20, 7
      %p73 = por %p71, %p72
      %p74 = scmp.ne.s32.totalorder %s65, %s66
      %p75 = scmp.eq.s32.totalorder %s20, 0
      %p76 = por %p74, %p75
      %p77 = scmp.ne.s32.totalorder %s65, %s66
      %p78 = scmp.eq.s32.totalorder %s21, 7
      %p79 = por %p77, %p78
      %p81 = scmp.ne.s32.totalorder %s66, %s80
      %p82 = scmp.eq.s32.totalorder %s21, 0
      %p83 = por %p81, %p82
      %s85 = sadd.s32 %s84, 1
      %p88 = scmp.eq.s32.totalorder %s15, 7
      %p89 = scmp.ne.s32.totalorder %s84, %s86
      %p90 = scmp.eq.s32.totalorder %s15, 0
      %p91 = por %p89, %p90
      %p92 = scmp.ne.s32.totalorder %s84, %s86
      %p93 = scmp.eq.s32.totalorder %s20, 7
      %p94 = por %p92, %p93
      %p95 = scmp.ne.s32.totalorder %s86, %s87
      %p96 = scmp.eq.s32.totalorder %s20, 0
      %p97 = por %p95, %p96
      %p98 = scmp.ne.s32.totalorder %s86, %s87
      %p99 = scmp.eq.s32.totalorder %s21, 7
      %p100 = por %p98, %p99
      %p102 = scmp.ne.s32.totalorder %s87, %s101
      %p103 = scmp.eq.s32.totalorder %s21, 0
      %p104 = por %p102, %p103
      %s105 = ssub.s32 %s22, %s34
      %s106 = ssub.s32 %s23, %s30
      %s107 = sor.u32 %s105, %s106
      %p108 = scmp.eq.s32.totalorder %s107, 0
      %s110 = sadd.s32 %s109, 1
      %s111 = scalar_select %p108, %s109, %s110
      %p114 = pneg %p108
      %p115 = scmp.eq.s32.totalorder %s15, 7
      %p116 = por %p114, %p115
      %p117 = scmp.ne.s32.totalorder %s109, %s112
      %p118 = scmp.eq.s32.totalorder %s15, 0
      %p119 = por %p117, %p118
      %p120 = scmp.ne.s32.totalorder %s109, %s112
      %p121 = scmp.eq.s32.totalorder %s20, 7
      %p122 = por %p120, %p121
      %p123 = scmp.ne.s32.totalorder %s112, %s113
      %p124 = scmp.eq.s32.totalorder %s20, 0
      %p125 = por %p123, %p124
      %p126 = scmp.ne.s32.totalorder %s112, %s113
      %p127 = scmp.eq.s32.totalorder %s21, 7
      %p128 = por %p126, %p127
      %p130 = scmp.ne.s32.totalorder %s113, %s129
      %p131 = scmp.eq.s32.totalorder %s21, 0
      %p132 = por %p130, %p131
      %p133 = scmp.le.s32.totalorder 1, %s15
      %p134 = scmp.lt.s32.totalorder %s15, 9
      %p135 = pnand %p133, %p134
      %p136 = pneg %p135
      // Predicated region
      $region9: #{tpu_custom_call.1} parent=5 // pred_check
        _
      $region10: #{tpu_custom_call.1} parent=5 // pred_check_branch
        %138 = sbr.rel (%p135) target = $region12
      $region11: #{tpu_custom_call.1} parent=5 // pred_region
        %s139 = ssub.s32 %s15, 1
        // Predicated region
        $region13: #{tpu_custom_call.1} parent=11 // pred_check
          %p140 = pneg %p76
        $region14: #{tpu_custom_call.1} parent=11 // pred_check_branch
          %142 = sbr.rel (%p140) target = $region16
        $region15: #{tpu_custom_call.1} parent=11 // pred_region
          _
        $region16: #{tpu_custom_call.1} parent=11 // pred_fallthru
          _
        // Predicated region
        $region17: #{tpu_custom_call.1} parent=11 // pred_check
          %p143 = pneg %p97
        $region18: #{tpu_custom_call.1} parent=11 // pred_check_branch
          %145 = sbr.rel (%p143) target = $region20
        $region19: #{tpu_custom_call.1} parent=11 // pred_region
          _
        $region20: #{tpu_custom_call.1} parent=11 // pred_fallthru
          _
      $region12: #{tpu_custom_call.1} parent=5 // pred_fallthru
        _
      %p146 = scmp.lt.s32.totalorder %s15, 8
      // Predicated region
      $region21: #{tpu_custom_call.1} parent=5 // pred_check
        %p147 = pneg %p146
      $region22: #{tpu_custom_call.1} parent=5 // pred_check_branch
        %149 = sbr.rel (%p147) target = $region24
      $region23: #{tpu_custom_call.1} parent=5 // pred_region
        // Predicated region
        $region25: #{tpu_custom_call.1} parent=23 // pred_check
          %p150 = pneg %p49
        $region26: #{tpu_custom_call.1} parent=23 // pred_check_branch
          %152 = sbr.rel (%p150) target = $region28
        $region27: #{tpu_custom_call.1} parent=23 // pred_region
          #allocation7 [shape = 'u32[6]{0}', space=smem, size = 0x18, scoped, tag = 'DMA stride descriptor']
          %s153 = sand.u32 %s39, 1
          %s154 = scalar_lea.sflag [#allocation3], %s153
          %s155 = sand.u32 %s39, 1
          %s156 = smul.addr %s155, 64
          %s157 = scalar_lea.vmem [#allocation2], %s156
          %s159 = ssub.s32 1024, 1024
          %160 = vsyncadd %s154, %s159
          %s161 = smul.addr %s23, 4
          %s162 = smul.addr %s22, 64
          %s163 = sadd.s32 %s161, %s162
          %s164 = smul.addr %s163, 64
          %s165 = scalar_lea.hbm %s0, %s164
          %s167 = sshll.u32 1, 14
          %s168 = sxor.u32 4294967295, %s167
          %s170 = sld [smem:[#allocation0]]
          %s171 = sadd.s32 2, %s170
          %s173 = sshll.u32 7, 26
          %s174 = sxor.u32 4294967295, %s173
          %s175 = sand.u32 0, %s174
          %s176 = sshll.u32 %s171, 26
          %s177 = sor.u32 %s175, %s176
          %s178 = sshll.u32 %s157, 4
          %s179 = int_to_ptr.vmem [resolvable:$true] %s178
          %185 = sst [smem:[#allocation7]] 1024
          %s186 = scalar_lea.smem [#allocation7], 1
          %187 = sst [smem:[%s186]] 256
          %s188 = scalar_lea.smem [#allocation7], 2
          %189 = sst [smem:[%s188]] 4
          %s190 = scalar_lea.smem [#allocation7], 3
          %191 = sst [smem:[%s190]] 64
          %s192 = scalar_lea.smem [#allocation7], 4
          %193 = sst [smem:[%s192]] 64
          %s194 = scalar_lea.smem [#allocation7], 5
          %195 = sst [smem:[%s194]] 4
          %197 = dma.general %s165, 1024, %s179, %s154, [#allocation6], [#allocation7], %s177, 0
        $region28: #{tpu_custom_call.1} parent=23 // pred_fallthru
          _
      $region24: #{tpu_custom_call.1} parent=5 // pred_fallthru
        _
      %p198 = scmp.le.s32.totalorder 1, %s15
      %p199 = scmp.lt.s32.totalorder %s15, 9
      %p200 = pnand %p198, %p199
      %p201 = pneg %p200
      // Predicated region
      $region29: #{tpu_custom_call.1} parent=5 // pred_check
        _
      $region30: #{tpu_custom_call.1} parent=5 // pred_check_branch
        %203 = sbr.rel (%p200) target = $region32
      $region31: #{tpu_custom_call.1} parent=5 // pred_region
        %s204 = ssub.s32 %s15, 1
        %s205 = sand.u32 %s42, 1
        %s206 = scalar_lea.sflag [#allocation3], %s205
        %s207 = sand.u32 %s42, 1
        %s208 = smul.addr %s207, 64
        %s209 = scalar_lea.vmem [#allocation2], %s208
        // Predicated region
        $region33: #{tpu_custom_call.1} parent=31 // pred_check
          %p210 = pneg %p55
        $region34: #{tpu_custom_call.1} parent=31 // pred_check_branch
          %212 = sbr.rel (%p210) target = $region36
        $region35: #{tpu_custom_call.1} parent=31 // pred_region
          %213 = dma.done %s206, 1024
        $region36: #{tpu_custom_call.1} parent=31 // pred_fallthru
          _
        %s214 = sand.u32 %s42, 1
        %s215 = scalar_lea.sflag [#allocation3], %s214
        %s216 = sand.u32 %s42, 1
        %s217 = smul.addr %s216, 64
        %s218 = scalar_lea.vmem [#allocation2], %s217
        %p219 = pneg %p55
        %p220 = pneg %p52
        %p221 = pneg %p76
        %p222 = pneg %p73
        %p223 = pneg %p97
        %p224 = pneg %p94
        %p225 = pneg %p125
        %p226 = pneg %p122
        %s227 = sand.u32 %s112, 1
        %s228 = scalar_lea.sflag [#allocation4], %s227
        %s229 = sand.u32 %s112, 1
        %s230 = smul.addr %s229, 4
        %s231 = scalar_lea.vmem [#allocation5], %s230
        %v232 = vld [vmem:[%s209] sm:$0xf]
        %s233 = scalar_lea.vmem %s209, 4 [#allocation2]
        %v234 = vld [vmem:[%s233] sm:$0xf]
        %s235 = scalar_lea.vmem %s209, 8 [#allocation2]
        %v236 = vld [vmem:[%s235] sm:$0xf]
        %s237 = scalar_lea.vmem %s209, 12 [#allocation2]
        %v238 = vld [vmem:[%s237] sm:$0xf]
        %s239 = scalar_lea.vmem %s209, 16 [#allocation2]
        %v240 = vld [vmem:[%s239] sm:$0xf]
        %s241 = scalar_lea.vmem %s209, 20 [#allocation2]
        %v242 = vld [vmem:[%s241] sm:$0xf]
        %s243 = scalar_lea.vmem %s209, 24 [#allocation2]
        %v244 = vld [vmem:[%s243] sm:$0xf]
        %s245 = scalar_lea.vmem %s209, 28 [#allocation2]
        %v246 = vld [vmem:[%s245] sm:$0xf]
        %s247 = scalar_lea.vmem %s209, 32 [#allocation2]
        %v248 = vld [vmem:[%s247] sm:$0xf]
        %s249 = scalar_lea.vmem %s209, 36 [#allocation2]
        %v250 = vld [vmem:[%s249] sm:$0xf]
        %s251 = scalar_lea.vmem %s209, 40 [#allocation2]
        %v252 = vld [vmem:[%s251] sm:$0xf]
        %s253 = scalar_lea.vmem %s209, 44 [#allocation2]
        %v254 = vld [vmem:[%s253] sm:$0xf]
        %s255 = scalar_lea.vmem %s209, 48 [#allocation2]
        %v256 = vld [vmem:[%s255] sm:$0xf]
        %s257 = scalar_lea.vmem %s209, 52 [#allocation2]
        %v258 = vld [vmem:[%s257] sm:$0xf]
        %s259 = scalar_lea.vmem %s209, 56 [#allocation2]
        %v260 = vld [vmem:[%s259] sm:$0xf]
        %s261 = scalar_lea.vmem %s209, 60 [#allocation2]
        %v262 = vld [vmem:[%s261] sm:$0xf]
        %264 = vrot.lane.b32.xlu0 %v234, 4
        %v265 = vpop.permute.xlu0 %264
        %268 = vrot.lane.b32.xlu0 %v236, 8
        %v269 = vpop.permute.xlu0 %268
        %272 = vrot.lane.b32.xlu0 %v238, 12
        %v273 = vpop.permute.xlu0 %272
        %276 = vrot.lane.b32.xlu0 %v240, 16
        %v277 = vpop.permute.xlu0 %276
        %280 = vrot.lane.b32.xlu0 %v242, 20
        %v281 = vpop.permute.xlu0 %280
        %284 = vrot.lane.b32.xlu0 %v244, 24
        %v285 = vpop.permute.xlu0 %284
        %288 = vrot.lane.b32.xlu0 %v246, 28
        %v289 = vpop.permute.xlu0 %288
        %292 = vrot.lane.b32.xlu0 %v248, 32
        %v293 = vpop.permute.xlu0 %292
        %296 = vrot.lane.b32.xlu0 %v250, 36
        %v297 = vpop.permute.xlu0 %296
        %300 = vrot.lane.b32.xlu0 %v252, 40
        %v301 = vpop.permute.xlu0 %300
        %304 = vrot.lane.b32.xlu0 %v254, 44
        %v305 = vpop.permute.xlu0 %304
        %308 = vrot.lane.b32.xlu0 %v256, 48
        %v309 = vpop.permute.xlu0 %308
        %312 = vrot.lane.b32.xlu0 %v258, 52
        %v313 = vpop.permute.xlu0 %312
        %316 = vrot.lane.b32.xlu0 %v260, 56
        %v317 = vpop.permute.xlu0 %316
        %320 = vrot.lane.b32.xlu0 %v262, 60
        %v321 = vpop.permute.xlu0 %320
        %vm323 = vcmask 31744
        %v324 = vsel %vm323, %v232, %v265
        %vm325 = vcmask 64512
        %v326 = vsel %vm325, %v324, %v269
        %vm327 = vcmask 97280
        %v328 = vsel %vm327, %v326, %v273
        %vm329 = vcmask 130048
        %v330 = vsel %vm329, %v328, %v277
        %vm331 = vcmask 162816
        %v332 = vsel %vm331, %v330, %v281
        %vm333 = vcmask 195584
        %v334 = vsel %vm333, %v332, %v285
        %vm335 = vcmask 228352
        %v336 = vsel %vm335, %v334, %v289
        %vm337 = vcmask 261120
        %v338 = vsel %vm337, %v336, %v293
        %vm339 = vcmask 293888
        %v340 = vsel %vm339, %v338, %v297
        %vm341 = vcmask 326656
        %v342 = vsel %vm341, %v340, %v301
        %vm343 = vcmask 359424
        %v344 = vsel %vm343, %v342, %v305
        %vm345 = vcmask 392192
        %v346 = vsel %vm345, %v344, %v309
        %vm347 = vcmask 424960
        %v348 = vsel %vm347, %v346, %v313
        %vm349 = vcmask 457728
        %v350 = vsel %vm349, %v348, %v317
        %vm351 = vcmask 490496
        %v352 = vsel %vm351, %v350, %v321
        %v353 = vld [vmem:[%s1] sm:$0xff]
        %v354 = vld [vmem:[%s1 + $0x8] sm:$0xff]
        %v355 = vld [vmem:[%s1 + $0x10] sm:$0xff]
        %v356 = vld [vmem:[%s1 + $0x18] sm:$0xff]
        %v357 = vld [vmem:[%s1 + $0x20] sm:$0xff]
        %v358 = vld [vmem:[%s1 + $0x28] sm:$0xff]
        %v359 = vld [vmem:[%s1 + $0x30] sm:$0xff]
        %v360 = vld [vmem:[%s1 + $0x38] sm:$0xff]
        %v361 = vld [vmem:[%s2] sm:$0x1]
        %v363 = vlaneseq
        %v364 = vshrl.u32 %v363, 7
        %v365 = vsub.s32 0, %v364
        %v366 = vrot.slane %v361, %v365
        %vm368 = vcmask 523264
        %v370 = vsel %vm368, %v352, 0
        %372 = vmatprep.subr.mxu0 0.0
        %373 = vmatpush1.msra.mxu0 %v353
        %374 = vmatprep.subr.mxu0 0.0
        %375 = vmatpush1.msra.mxu0 %v354
        %376 = vmatprep.subr.mxu0 0.0
        %377 = vmatpush1.msra.mxu0 %v355
        %378 = vmatprep.subr.mxu0 0.0
        %379 = vmatpush1.msra.mxu0 %v356
        %380 = vmatprep.subr.mxu0 0.0
        %381 = vmatpush1.msra.mxu0 %v357
        %382 = vmatprep.subr.mxu0 0.0
        %383 = vmatpush1.msra.mxu0 %v358
        %384 = vmatprep.subr.mxu0 0.0
        %385 = vmatpush1.msra.mxu0 %v359
        %386 = vmatprep.subr.mxu0 0.0
        %387 = vmatpush1.msra.mxu0 %v360
        %388 = vmatprep.subr.mxu0 0.0
        %389 = vmatpush1.msra.mxu0 0.0
        %390 = vmatprep.subr.mxu0 0.0
        %391 = vmatpush1.msra.mxu0 0.0
        %392 = vmatprep.subr.mxu0 0.0
        %393 = vmatpush1.msra.mxu0 0.0
        %394 = vmatprep.subr.mxu0 0.0
        %395 = vmatpush1.msra.mxu0 0.0
        %396 = vmatprep.subr.mxu0 0.0
        %397 = vmatpush1.msra.mxu0 0.0
        %398 = vmatprep.subr.mxu0 0.0
        %399 = vmatpush1.msra.mxu0 0.0
        %400 = vmatprep.subr.mxu0 0.0
        %401 = vmatpush1.msra.mxu0 0.0
        %402 = vmatprep.subr.mxu0 0.0
        %403 = vmatpush1.msra.mxu0 0.0
        %404 = vmatprep.subr.mxu0 0.0
        %405 = vmatpush1.msra.mxu0 0.0
        %406 = vmatprep.subr.mxu0 0.0
        %407 = vmatpush1.msra.mxu0 0.0
        %408 = vmatprep.subr.mxu0 0.0
        %409 = vmatpush1.msra.mxu0 0.0
        %410 = vmatprep.subr.mxu0 0.0
        %411 = vmatpush1.msra.mxu0 0.0
        %412 = vmatprep.subr.mxu0 0.0
        %413 = vmatpush1.msra.mxu0 0.0
        %414 = vmatprep.subr.mxu0 0.0
        %415 = vmatpush1.msra.mxu0 0.0
        %416 = vmatprep.subr.mxu0 0.0
        %417 = vmatpush1.msra.mxu0 0.0
        %418 = vmatprep.subr.mxu0 0.0
        %419 = vmatpush1.msra.mxu0 0.0
        %420 = vmatprep.subr.mxu0 0.0
        %421 = vmatpush1.msra.mxu0 0.0
        %422 = vmatprep.subr.mxu0 0.0
        %423 = vmatpush1.msra.mxu0 0.0
        %424 = vmatprep.subr.mxu0 0.0
        %425 = vmatpush1.msra.mxu0 0.0
        %426 = vmatprep.subr.mxu0 0.0
        %427 = vmatpush1.msra.mxu0 0.0
        %428 = vmatprep.subr.mxu0 0.0
        %429 = vmatpush1.msra.mxu0 0.0
        %430 = vmatprep.subr.mxu0 0.0
        %431 = vmatpush1.msra.mxu0 0.0
        %432 = vmatprep.subr.mxu0 0.0
        %433 = vmatpush1.msra.mxu0 0.0
        %434 = vmatprep.subr.mxu0 0.0
        %435 = vmatpush1.msra.mxu0 0.0
        %436 = vmatprep.mubr.f32.mxu0 0.0
        %437 = vmatmul.mubr.f32.gmra.mrb[0].mxu0 %v370
        %v438 = vpop.f32.mrb[0].mxu0
        %v439 = vadd.f32 %v366, %v438
        %v440 = vpop.f32.mrb[0].mxu0
        %441 = vdwg.mxu0
        %vm442 = vcmask 257024
        %443 = vst.msk [vmem:[%s231] sm:$0xf] %vm442, %v439
        %s444 = sand.u32 %s112, 1
        %s445 = scalar_lea.sflag [#allocation4], %s444
        %s446 = sand.u32 %s112, 1
        %s447 = smul.addr %s446, 4
        %s448 = scalar_lea.vmem [#allocation5], %s447
        // Predicated region
        $region37: #{tpu_custom_call.1} parent=31 // pred_check
          %p449 = pneg %p122
        $region38: #{tpu_custom_call.1} parent=31 // pred_check_branch
          %451 = sbr.rel (%p449) target = $region40
        $region39: #{tpu_custom_call.1} parent=31 // pred_region
          %s453 = ssub.s32 64, 64
          %454 = vsyncadd %s445, %s453
          %s455 = smul.addr %s24, 4
          %s456 = sadd.s32 %s25, %s455
          %s457 = smul.addr %s456, 64
          %s458 = scalar_lea.hbm %s3, %s457
          %s460 = sshll.u32 %s448, 4
          %s461 = int_to_ptr.vmem [resolvable:$true] %s460
          %463 = dma.vmem_to_hbm [thread:$0]  %s461, 64, %s458, %s445
        $region40: #{tpu_custom_call.1} parent=31 // pred_fallthru
          _
      $region32: #{tpu_custom_call.1} parent=5 // pred_fallthru
        _
      %p464 = scmp.le.s32.totalorder 2, %s15
      // Predicated region
      $region41: #{tpu_custom_call.1} parent=5 // pred_check
        %p465 = pneg %p464
      $region42: #{tpu_custom_call.1} parent=5 // pred_check_branch
        %467 = sbr.rel (%p465) target = $region44
      $region43: #{tpu_custom_call.1} parent=5 // pred_region
        %s468 = ssub.s32 %s15, 2
        // Predicated region
        $region45: #{tpu_custom_call.1} parent=43 // pred_check
          %p469 = pneg %p128
        $region46: #{tpu_custom_call.1} parent=43 // pred_check_branch
          %471 = sbr.rel (%p469) target = $region48
        $region47: #{tpu_custom_call.1} parent=43 // pred_region
          %s472 = sand.u32 %s113, 1
          %s473 = scalar_lea.sflag [#allocation4], %s472
          %s474 = sand.u32 %s113, 1
          %s475 = smul.addr %s474, 4
          %s476 = scalar_lea.vmem [#allocation5], %s475
          %477 = dma.done %s473, 64
        $region48: #{tpu_custom_call.1} parent=43 // pred_fallthru
          _
      $region44: #{tpu_custom_call.1} parent=5 // pred_fallthru
        _
    $region6: #{tpu_custom_call.1} parent=1 // loop_footer
      %s19 = sadd.s32 1, %s15
    $region7: #{tpu_custom_call.1} parent=1 // loop_footer_branch
      %14 = sbr.rel target = $region3
    $region8: #{tpu_custom_call.1} parent=1 // loop_exit
      _
    %478 = vsyncpa [#allocation3], 1
    %s479 = scalar_lea.sflag [#allocation3], 1
    %480 = vsyncpa %s479, 1
    %481 = vsyncpa [#allocation4], 1
    %s482 = scalar_lea.sflag [#allocation4], 1
    %483 = vsyncpa %s482, 1

// kernel: tpu_custom_call.1
$region0: #{tpu_custom_call.1}
  #allocation0 [shape = 'u32[]', space=smem, size = 0x4, offset = 0x4, fixed_abs, tag = 'smem constant byte address 0x4 - core index']
  #allocation1 [shape = 'u32[144,128]{1,0:T(1,128)}', space=vmem, size = 0x12000, scoped, tag = 'internal scratch']
  %s0 = inlined_call_operand.vmem [shape: f32[32,64], index: 0, kind: input, shape index: {}]
  %s1 = inlined_call_operand.vmem [shape: f32[64,32], index: 1, kind: input, shape index: {}]
  %s2 = inlined_call_operand.vmem [shape: f32[1,32], index: 2, kind: input, shape index: {}]
  %s3 = inlined_call_operand.hbm [shape: f32[32,32], index: 3, kind: output, shape index: {}]
  %s4 = sld [smem:[#allocation0]]
  $region22: #{tpu_custom_call.1} parent=0
    _
  %s6 = ssub.s32 1, %s4
  %s7 = scalar_select 0, %s6, %s4
  $region1: #{tpu_custom_call.1} parent=0
    #allocation2 [shape = 'u8[16384]{0}', space=vmem, size = 0x4000, scoped, tag = 'output window, operand 0, single buffered']
    #allocation3 [shape = 's32[1]{0}', space=sflag, size = 0x4, scoped, tag = 'scoped memory for tpu_custom_call.1']
    %8 = vsyncpa [#allocation3], 0
    // Predicated region
    $region2: #{tpu_custom_call.1} parent=1 // pred_check
      _
    $region3: #{tpu_custom_call.1} parent=1 // pred_check_branch
      %10 = sbr.rel (0) target = $region5
    $region4: #{tpu_custom_call.1} parent=1 // pred_region
      _
    $region5: #{tpu_custom_call.1} parent=1 // pred_fallthru
      _
    // Predicated region
    $region6: #{tpu_custom_call.1} parent=1 // pred_check
      _
    $region7: #{tpu_custom_call.1} parent=1 // pred_check_branch
      %12 = sbr.rel (0) target = $region9
    $region8: #{tpu_custom_call.1} parent=1 // pred_region
      _
    $region9: #{tpu_custom_call.1} parent=1 // pred_fallthru
      _
    // Predicated region
    $region10: #{tpu_custom_call.1} parent=1 // pred_check
      _
    $region11: #{tpu_custom_call.1} parent=1 // pred_check_branch
      %14 = sbr.rel (0) target = $region13
    $region12: #{tpu_custom_call.1} parent=1 // pred_region
      _
    $region13: #{tpu_custom_call.1} parent=1 // pred_fallthru
      _
    %v15 = vld [vmem:[%s0] sm:$0xff]
    %v16 = vld [vmem:[%s0 + $0x8] sm:$0xff]
    %v17 = vld [vmem:[%s0 + $0x10] sm:$0xff]
    %v18 = vld [vmem:[%s0 + $0x18] sm:$0xff]
    %v19 = vld [vmem:[%s1] sm:$0xff]
    %v20 = vld [vmem:[%s1 + $0x8] sm:$0xff]
    %v21 = vld [vmem:[%s1 + $0x10] sm:$0xff]
    %v22 = vld [vmem:[%s1 + $0x18] sm:$0xff]
    %v23 = vld [vmem:[%s1 + $0x20] sm:$0xff]
    %v24 = vld [vmem:[%s1 + $0x28] sm:$0xff]
    %v25 = vld [vmem:[%s1 + $0x30] sm:$0xff]
    %v26 = vld [vmem:[%s1 + $0x38] sm:$0xff]
    %v27 = vld [vmem:[%s2] sm:$0x1]
    %v29 = vlaneseq
    %v30 = vshrl.u32 %v29, 7
    %v31 = vsub.s32 0, %v30
    %v32 = vrot.slane %v27, %v31
    %vm34 = vcmask 523264
    %v36 = vsel %vm34, %v15, 0
    %v39 = vsel %vm34, %v16, 0
    %v42 = vsel %vm34, %v17, 0
    %v45 = vsel %vm34, %v18, 0
    %47 = vmatprep.subr.mxu0 0.0
    %48 = vmatpush1.msra.mxu0 %v19
    %49 = vmatprep.subr.mxu0 0.0
    %50 = vmatpush1.msra.mxu0 %v20
    %51 = vmatprep.subr.mxu0 0.0
    %52 = vmatpush1.msra.mxu0 %v21
    %53 = vmatprep.subr.mxu0 0.0
    %54 = vmatpush1.msra.mxu0 %v22
    %55 = vmatprep.subr.mxu0 0.0
    %56 = vmatpush1.msra.mxu0 %v23
    %57 = vmatprep.subr.mxu0 0.0
    %58 = vmatpush1.msra.mxu0 %v24
    %59 = vmatprep.subr.mxu0 0.0
    %60 = vmatpush1.msra.mxu0 %v25
    %61 = vmatprep.subr.mxu0 0.0
    %62 = vmatpush1.msra.mxu0 %v26
    %63 = vmatprep.subr.mxu0 0.0
    %64 = vmatpush1.msra.mxu0 0.0
    %65 = vmatprep.subr.mxu0 0.0
    %66 = vmatpush1.msra.mxu0 0.0
    %67 = vmatprep.subr.mxu0 0.0
    %68 = vmatpush1.msra.mxu0 0.0
    %69 = vmatprep.subr.mxu0 0.0
    %70 = vmatpush1.msra.mxu0 0.0
    %71 = vmatprep.subr.mxu0 0.0
    %72 = vmatpush1.msra.mxu0 0.0
    %73 = vmatprep.subr.mxu0 0.0
    %74 = vmatpush1.msra.mxu0 0.0
    %75 = vmatprep.subr.mxu0 0.0
    %76 = vmatpush1.msra.mxu0 0.0
    %77 = vmatprep.subr.mxu0 0.0
    %78 = vmatpush1.msra.mxu0 0.0
    %79 = vmatprep.subr.mxu0 0.0
    %80 = vmatpush1.msra.mxu0 0.0
    %81 = vmatprep.subr.mxu0 0.0
    %82 = vmatpush1.msra.mxu0 0.0
    %83 = vmatprep.subr.mxu0 0.0
    %84 = vmatpush1.msra.mxu0 0.0
    %85 = vmatprep.subr.mxu0 0.0
    %86 = vmatpush1.msra.mxu0 0.0
    %87 = vmatprep.subr.mxu0 0.0
    %88 = vmatpush1.msra.mxu0 0.0
    %89 = vmatprep.subr.mxu0 0.0
    %90 = vmatpush1.msra.mxu0 0.0
    %91 = vmatprep.subr.mxu0 0.0
    %92 = vmatpush1.msra.mxu0 0.0
    %93 = vmatprep.subr.mxu0 0.0
    %94 = vmatpush1.msra.mxu0 0.0
    %95 = vmatprep.subr.mxu0 0.0
    %96 = vmatpush1.msra.mxu0 0.0
    %97 = vmatprep.subr.mxu0 0.0
    %98 = vmatpush1.msra.mxu0 0.0
    %99 = vmatprep.subr.mxu0 0.0
    %100 = vmatpush1.msra.mxu0 0.0
    %101 = vmatprep.subr.mxu0 0.0
    %102 = vmatpush1.msra.mxu0 0.0
    %103 = vmatprep.subr.mxu0 0.0
    %104 = vmatpush1.msra.mxu0 0.0
    %105 = vmatprep.subr.mxu0 0.0
    %106 = vmatpush1.msra.mxu0 0.0
    %107 = vmatprep.subr.mxu0 0.0
    %108 = vmatpush1.msra.mxu0 0.0
    %109 = vmatprep.subr.mxu0 0.0
    %110 = vmatpush1.msra.mxu0 0.0
    %111 = vmatprep.mubr.f32.mxu0 0.0
    %112 = vmatmul.mubr.f32.gmra.mrb[0].mxu0 %v36
    %v113 = vpop.f32.mrb[0].mxu0
    %v114 = vadd.f32 %v32, %v113
    %v115 = vpop.f32.mrb[0].mxu0
    %116 = vmatprep.mubr.f32.mxu0 0.0
    %117 = vmatmul.mubr.f32.gmra.mrb[0].mxu0 %v39
    %v118 = vpop.f32.mrb[0].mxu0
    %v119 = vadd.f32 %v32, %v118
    %v120 = vpop.f32.mrb[0].mxu0
    %121 = vmatprep.mubr.f32.mxu0 0.0
    %122 = vmatmul.mubr.f32.gmra.mrb[0].mxu0 %v42
    %v123 = vpop.f32.mrb[0].mxu0
    %v124 = vadd.f32 %v32, %v123
    %v125 = vpop.f32.mrb[0].mxu0
    %126 = vmatprep.mubr.f32.mxu0 0.0
    %127 = vmatmul.mubr.f32.gmra.mrb[0].mxu0 %v45
    %v128 = vpop.f32.mrb[0].mxu0
    %v129 = vadd.f32 %v32, %v128
    %v130 = vpop.f32.mrb[0].mxu0
    %131 = vdwg.mxu0
    %vm132 = vcmask 261120
    %133 = vst.msk [vmem:[#allocation2] sm:$0xff] %vm132, %v114
    %134 = vst.msk [vmem:[#allocation2 + $0x8] sm:$0xff] %vm132, %v119
    %135 = vst.msk [vmem:[#allocation2 + $0x10] sm:$0xff] %vm132, %v124
    %136 = vst.msk [vmem:[#allocation2 + $0x18] sm:$0xff] %vm132, %v129
    // Predicated region
    $region14: #{tpu_custom_call.1} parent=1 // pred_check
      _
    $region15: #{tpu_custom_call.1} parent=1 // pred_check_branch
      %138 = sbr.rel (0) target = $region17
    $region16: #{tpu_custom_call.1} parent=1 // pred_region
      %s140 = ssub.s32 512, 512
      %141 = vsyncadd [#allocation3], %s140
      %s142 = sshll.u32 [#allocation2], 4
      %s143 = int_to_ptr.vmem [resolvable:$true] %s142
      %148 = dma.vmem_to_hbm [thread:$0]  %s143, 512, %s3, [#allocation3], 128, 128, 8
    $region17: #{tpu_custom_call.1} parent=1 // pred_fallthru
      _
    // Predicated region
    $region18: #{tpu_custom_call.1} parent=1 // pred_check
      _
    $region19: #{tpu_custom_call.1} parent=1 // pred_check_branch
      %150 = sbr.rel (0) target = $region21
    $region20: #{tpu_custom_call.1} parent=1 // pred_region
      %151 = dma.done [#allocation3], 512
    $region21: #{tpu_custom_call.1} parent=1 // pred_fallthru
      _
    %152 = vsyncpa [#allocation3], 1

</llo_original>
